<compile_context>
chip_gen: v6e
topology: v6e:2x2x1
jax: 0.10.0
libtpu: 0.0.40
codegen_flags: <defaults>
</compile_context>

<pallas_src>
import functools

import jax
import jax.numpy as jnp
from jax.experimental import pallas as pl
from jax.experimental.pallas import tpu as pltpu


# ---------------------------------------------------------------------------
# Kernels
# ---------------------------------------------------------------------------

def _ce2d_kernel_sublane(x_ref, t_ref, sum_ref, cnt_ref, acc_sum, acc_cnt, *,
                         hw8, tile8, tiles_per_chunk, ignore_index,
                         needs_tail_mask):
    """Pixels on sublanes+lanes: logits block (1, C, 8, tile8), targets (1, 8, tile8)."""
    p = pl.program_id(1)
    i = pl.program_id(2)

    @pl.when(i == 0)
    def _():
        acc_sum[...] = jnp.zeros_like(acc_sum)
        acc_cnt[...] = jnp.zeros_like(acc_cnt)

    x = x_ref[0].astype(jnp.float32)          # (C, 8, tile8): full vregs per class slab
    t = t_ref[0]                              # (8, tile8) int32 labels

    # -log_softmax(x)[t] == logsumexp(x) - x[t]  (stable; no probs / divide).
    # Class axis is the leading slab axis -> reductions are elementwise VALU ops.
    m = jnp.max(x, axis=0)                                        # (8, tile8)
    lse = m + jnp.log(jnp.sum(jnp.exp(x - m[None]), axis=0))      # (8, tile8)
    cls = jax.lax.broadcasted_iota(jnp.int32, x.shape, 0)         # (C, 8, tile8)
    x_t = jnp.sum(jnp.where(cls == t[None], x, 0.0), axis=0)      # (8, tile8)
    loss = lse - x_t
    # TODO(synk): targets outside [0, C) other than ignore_index yield loss = lse
    # (PyTorch would raise); add pl.debug_check if needed.

    valid = t != ignore_index
    if needs_tail_mask:
        # Scalar remaining-column bound; only compiled in when the tile is ragged.
        rem = hw8 - (p * tiles_per_chunk + i) * tile8
        col = jax.lax.broadcasted_iota(jnp.int32, t.shape, 1)
        valid = valid & (col < rem)

    acc_sum[...] += jnp.where(valid, loss, 0.0)
    acc_cnt[...] += valid.astype(jnp.float32)

    @pl.when(i == pl.num_programs(2) - 1)
    def _():
        sum_ref[0, 0] = jnp.sum(acc_sum[...], keepdims=True)
        cnt_ref[0, 0] = jnp.sum(acc_cnt[...], keepdims=True)


def _ce2d_kernel_lane(x_ref, t_ref, sum_ref, cnt_ref, acc_sum, acc_cnt, *,
                      hw, tile_hw, tiles_per_chunk, ignore_index,
                      needs_tail_mask):
    """Fallback (HW % 8 != 0): logits block (1, C, tile_hw), targets (1, 1, tile_hw)."""
    p = pl.program_id(1)
    i = pl.program_id(2)

    @pl.when(i == 0)
    def _():
        acc_sum[...] = jnp.zeros_like(acc_sum)
        acc_cnt[...] = jnp.zeros_like(acc_cnt)

    x = x_ref[0].astype(jnp.float32)          # (C, tile_hw): classes on sublanes
    t = t_ref[0]                              # (1, tile_hw) int32

    m = jnp.max(x, axis=0, keepdims=True)                                 # (1, tile_hw)
    lse = m + jnp.log(jnp.sum(jnp.exp(x - m), axis=0, keepdims=True))     # (1, tile_hw)
    cls = jax.lax.broadcasted_iota(jnp.int32, x.shape, 0)
    x_t = jnp.sum(jnp.where(cls == t, x, 0.0), axis=0, keepdims=True)
    loss = lse - x_t

    valid = t != ignore_index
    if needs_tail_mask:
        rem = hw - (p * tiles_per_chunk + i) * tile_hw
        col = jax.lax.broadcasted_iota(jnp.int32, t.shape, 1)
        valid = valid & (col < rem)

    acc_sum[...] += jnp.where(valid, loss, 0.0)
    acc_cnt[...] += valid.astype(jnp.float32)

    @pl.when(i == pl.num_programs(2) - 1)
    def _():
        sum_ref[0, 0] = jnp.sum(acc_sum[...], keepdims=True)
        cnt_ref[0, 0] = jnp.sum(acc_cnt[...], keepdims=True)


# ---------------------------------------------------------------------------
# Tile / grid sizing helpers (padded VMEM footprints)
# ---------------------------------------------------------------------------

_TARGET_BLOCK_BYTES = 6 << 20       # ~6 MiB of logits per grid step
_VMEM_BUDGET = 36 << 20             # safe under v7x's 64 MiB/TC with headroom
_VMEM_LIMIT = 48 * 1024 * 1024


def _choose_tile8(hw8, n_classes, itemsize):
    """Lane-dim tile (columns of the (8, HW/8) pixel plane); multiple of 128."""
    if hw8 <= 128:
        return int(hw8)                                   # full extent: always legal
    col_logits = n_classes * 8 * itemsize                 # bytes / column, one logits block
    # 2x logits (double buffer) + ~4x full-size elementwise intermediates
    # + 2x targets block (i32) + 2 f32 scratch rows.
    col_vmem = 6 * col_logits + 2 * 8 * 4 + 2 * 8 * 4
    t = min(_TARGET_BLOCK_BYTES // col_logits, _VMEM_BUDGET // col_vmem, hw8)
    return int(max(128, (t // 128) * 128))


def _choose_tile_lane(hw, n_classes, itemsize):
    if hw <= 256:
        return int(hw)
    c_pad = -(-n_classes // 8) * 8                        # C pads up to a sublane multiple
    col_logits = c_pad * itemsize
    col_vmem = 6 * col_logits + 2 * 8 * 4 + 2 * 8 * 4
    t = min(_TARGET_BLOCK_BYTES // col_logits, _VMEM_BUDGET // col_vmem, hw)
    return int(max(128, (t // 128) * 128))


def _sanitize_tile(t, full):
    if t >= full:
        return int(full)
    return int(min(max(128, (t // 128) * 128), full))


def _pick_num_chunks(num_tiles):
    """Extra 'parallel' pixel-chunk axis so v7x's 2nd TensorCore has work at small N."""
    if num_tiles >= 2 and num_tiles % 2 == 0:
        return 2
    return 1


# ---------------------------------------------------------------------------
# Wrapper
# ---------------------------------------------------------------------------

def cross_entropy_loss_2d(logits_nchw, targets_nhw, *, size_average=True,
                          ignore_index=-100, tile_hw=None):
    # TODO(synk): optional per-class `weight` vector (module default weight=None)
    # is not implemented.
    N, C, H, W = logits_nchw.shape
    HW = H * W
    itemsize = jnp.dtype(logits_nchw.dtype).itemsize
    targets = targets_nhw.astype(jnp.int32)

    common = dict(
        compiler_params=pltpu.CompilerParams(
            dimension_semantics=("parallel", "parallel", "arbitrary"),
            vmem_limit_bytes=_VMEM_LIMIT),
        cost_estimate=pl.CostEstimate(
            flops=int(6 * N * C * HW),
            transcendentals=int(N * C * HW),
            bytes_accessed=int(N * C * HW * itemsize + N * HW * 4)),
    )

    if HW % 8 == 0:
        # ---- primary path: pixels on sublanes AND lanes --------------------
        HW8 = HW // 8
        x = logits_nchw.reshape(N, C, 8, HW8)            # free reshape (contiguous regroup)
        t = targets.reshape(N, 8, HW8)

        if tile_hw is None:
            tile8 = _choose_tile8(HW8, C, itemsize)
        else:
            tile8 = _sanitize_tile(max(1, tile_hw // 8), HW8)

        num_tiles = pl.cdiv(HW8, tile8)
        P = _pick_num_chunks(num_tiles)
        tpc = num_tiles // P
        needs_tail_mask = (num_tiles * tile8 != HW8)

        kernel = functools.partial(
            _ce2d_kernel_sublane, hw8=HW8, tile8=tile8, tiles_per_chunk=tpc,
            ignore_index=int(ignore_index), needs_tail_mask=needs_tail_mask)

        sums, cnts = pl.pallas_call(
            kernel,
            out_shape=(jax.ShapeDtypeStruct((N, P, 1, 1), jnp.float32),
                       jax.ShapeDtypeStruct((N, P, 1, 1), jnp.float32)),
            grid_spec=pltpu.PrefetchScalarGridSpec(
                num_scalar_prefetch=0,
                grid=(N, P, tpc),
                in_specs=[pl.BlockSpec((1, C, 8, tile8),
                                       lambda n, p, i: (n, 0, 0, p * tpc + i)),
                          pl.BlockSpec((1, 8, tile8),
                                       lambda n, p, i: (n, 0, p * tpc + i))],
                out_specs=(pl.BlockSpec((1, 1, 1, 1), lambda n, p, i: (n, p, 0, 0)),
                           pl.BlockSpec((1, 1, 1, 1), lambda n, p, i: (n, p, 0, 0))),
                scratch_shapes=[pltpu.VMEM((8, tile8), jnp.float32),
                                pltpu.VMEM((8, tile8), jnp.float32)],
            ),
            **common,
        )(x, t)
    else:
        # ---- fallback path: pixels on lanes only ---------------------------
        x = logits_nchw.reshape(N, C, HW)
        t = targets.reshape(N, 1, HW)

        if tile_hw is None:
            tile = _choose_tile_lane(HW, C, itemsize)
        else:
            tile = _sanitize_tile(tile_hw, HW)

        num_tiles = pl.cdiv(HW, tile)
        P = _pick_num_chunks(num_tiles)
        tpc = num_tiles // P
        needs_tail_mask = (num_tiles * tile != HW)

        kernel = functools.partial(
            _ce2d_kernel_lane, hw=HW, tile_hw=tile, tiles_per_chunk=tpc,
            ignore_index=int(ignore_index), needs_tail_mask=needs_tail_mask)

        sums, cnts = pl.pallas_call(
            kernel,
            out_shape=(jax.ShapeDtypeStruct((N, P, 1, 1), jnp.float32),
                       jax.ShapeDtypeStruct((N, P, 1, 1), jnp.float32)),
            grid_spec=pltpu.PrefetchScalarGridSpec(
                num_scalar_prefetch=0,
                grid=(N, P, tpc),
                in_specs=[pl.BlockSpec((1, C, tile),
                                       lambda n, p, i: (n, 0, p * tpc + i)),
                          pl.BlockSpec((1, 1, tile),
                                       lambda n, p, i: (n, 0, p * tpc + i))],
                out_specs=(pl.BlockSpec((1, 1, 1, 1), lambda n, p, i: (n, p, 0, 0)),
                           pl.BlockSpec((1, 1, 1, 1), lambda n, p, i: (n, p, 0, 0))),
                scratch_shapes=[pltpu.VMEM((1, tile), jnp.float32),
                                pltpu.VMEM((1, tile), jnp.float32)],
            ),
            **common,
        )(x, t)

    total = jnp.sum(sums)
    count = jnp.sum(cnts)
    if size_average:
        # PyTorch-faithful: mean over non-ignored pixels (NaN if all are ignored).
        return total / count
    return total


# ---------------------------------------------------------------------------
# Pure-JAX reference (mirrors the PyTorch forward)
# ---------------------------------------------------------------------------

def _ce2d_ref(logits_nchw, targets_nhw, *, size_average=True, ignore_index=-100):
    logp = jax.nn.log_softmax(logits_nchw.astype(jnp.float32), axis=1)   # (N, C, H, W)
    valid = targets_nhw != ignore_index
    t_safe = jnp.where(valid, targets_nhw, 0).astype(jnp.int32)
    picked = jnp.take_along_axis(logp, t_safe[:, None], axis=1)[:, 0]    # (N, H, W)
    loss = jnp.where(valid, -picked, 0.0)
    total = jnp.sum(loss)
    return total / jnp.sum(valid) if size_average else total


if __name__ == "__main__":
    key = jax.random.PRNGKey(0)
    k1, k2, k3, k4, k5, k6 = jax.random.split(key, 6)

    # Case 1: small NCHW logits, ignore_index pixels, mean and sum reductions.
    N, C, H, W = 2, 4, 16, 16
    logits = jax.random.normal(k1, (N, C, H, W), dtype=jnp.float32)
    targets = jax.random.randint(k2, (N, H, W), 0, C, dtype=jnp.int32)
    targets = targets.at[0, 0, :5].set(-100)
    out = jax.block_until_ready(cross_entropy_loss_2d(logits, targets))
    ref = _ce2d_ref(logits, targets)
    assert jnp.allclose(out, ref, atol=1e-5, rtol=1e-5), (out, ref)
    out_s = jax.block_until_ready(cross_entropy_loss_2d(logits, targets,
                                                        size_average=False))
    ref_s = _ce2d_ref(logits, targets, size_average=False)
    assert jnp.allclose(out_s, ref_s, atol=1e-4, rtol=1e-5), (out_s, ref_s)

    # Case 2: sublane path, multi-tile + ragged tail + 2-chunk parallel axis.
    N2, C2, H2, W2 = 1, 5, 16, 80           # HW=1280, HW/8=160, tile8=128 -> 2 tiles
    logits2 = jax.random.normal(k3, (N2, C2, H2, W2), dtype=jnp.float32)
    targets2 = jax.random.randint(k4, (N2, H2, W2), 0, C2, dtype=jnp.int32)
    targets2 = targets2.at[0, 0, :3].set(-100)
    out2 = jax.block_until_ready(cross_entropy_loss_2d(logits2, targets2,
                                                       tile_hw=1024))
    ref2 = _ce2d_ref(logits2, targets2)
    assert jnp.allclose(out2, ref2, atol=1e-5, rtol=1e-5), (out2, ref2)

    # Case 3: fallback lane-only path (HW % 8 != 0) with a ragged last tile.
    N3, C3, H3, W3 = 2, 3, 5, 49            # HW=245
    logits3 = jax.random.normal(k5, (N3, C3, H3, W3), dtype=jnp.float32)
    targets3 = jax.random.randint(k6, (N3, H3, W3), 0, C3, dtype=jnp.int32)
    out3 = jax.block_until_ready(cross_entropy_loss_2d(logits3, targets3,
                                                       tile_hw=128))
    ref3 = _ce2d_ref(logits3, targets3)
    assert jnp.allclose(out3, ref3, atol=1e-5, rtol=1e-5), (out3, ref3)

    # Case 4: bf16 logits stay bf16 in HBM (kernel upcasts per block).
    logits_bf16 = logits.astype(jnp.bfloat16)
    out4 = jax.block_until_ready(cross_entropy_loss_2d(logits_bf16, targets))
    ref4 = _ce2d_ref(logits_bf16, targets)
    assert jnp.allclose(out4, ref4, atol=1e-4, rtol=1e-4), (out4, ref4)

    print("KERNEL_OK")
</pallas_src>

<mosaic_0001>
module attributes {stable_mosaic.version = 11 : i64} {
  func.func @_ce2d_kernel_sublane(%arg0: i32, %arg1: i32, %arg2: i32, %arg3: memref<1x4x8x32xf32, #tpu.memory_space<vmem>>, %arg4: memref<1x8x32xi32, #tpu.memory_space<vmem>>, %arg5: memref<1x1x1x1xf32, #tpu.memory_space<vmem>>, %arg6: memref<1x1x1x1xf32, #tpu.memory_space<vmem>>, %arg7: memref<8x32xf32, #tpu.memory_space<vmem>>, %arg8: memref<8x32xf32, #tpu.memory_space<vmem>>) attributes {dimension_semantics = [#tpu.dimension_semantics<parallel>, #tpu.dimension_semantics<parallel>, #tpu.dimension_semantics<arbitrary>], iteration_bounds = array<i64: 2, 1, 1>, scalar_prefetch = 0 : i64, scratch_operands = 2 : i64, tpu.core_type = #tpu.core_type<tc>, window_params = [{transform_indices = @transform_0, window_bounds = array<i64: 1, 4, 8, 32>}, {transform_indices = @transform_1, window_bounds = array<i64: 1, 8, 32>}, {transform_indices = @transform_2, window_bounds = array<i64: 1, 1, 1, 1>}, {transform_indices = @transform_3, window_bounds = array<i64: 1, 1, 1, 1>}]} {
    %c0_i32 = arith.constant 0 : i32
    %0 = arith.cmpi eq, %arg2, %c0_i32 : i32
    %1 = arith.extui %0 : i1 to i32
    %c0_i32_0 = arith.constant 0 : i32
    %2 = arith.cmpi ne, %1, %c0_i32_0 : i32
    scf.if %2 {
      %cst_21 = arith.constant 0.000000e+00 : f32
      %38 = vector.broadcast %cst_21 : f32 to vector<8x32xf32>
      %c0_22 = arith.constant 0 : index
      %c0_23 = arith.constant 0 : index
      %39 = vector.load %arg7[%c0_22, %c0_23] : memref<8x32xf32, #tpu.memory_space<vmem>>, vector<8x32xf32>
      tpu.vector_store %arg7[%c0_22, %c0_23], %38 {strides = array<i32>} : memref<8x32xf32, #tpu.memory_space<vmem>>, vector<8x32xf32>,
      %cst_24 = arith.constant 0.000000e+00 : f32
      %40 = vector.broadcast %cst_24 : f32 to vector<8x32xf32>
      %c0_25 = arith.constant 0 : index
      %c0_26 = arith.constant 0 : index
      %41 = vector.load %arg8[%c0_25, %c0_26] : memref<8x32xf32, #tpu.memory_space<vmem>>, vector<8x32xf32>
      tpu.vector_store %arg8[%c0_25, %c0_26], %40 {strides = array<i32>} : memref<8x32xf32, #tpu.memory_space<vmem>>, vector<8x32xf32>,
    } else {
    }
    %c0 = arith.constant 0 : index
    %c0_1 = arith.constant 0 : index
    %c0_2 = arith.constant 0 : index
    %c0_3 = arith.constant 0 : index
    %3 = vector.load %arg3[%c0, %c0_1, %c0_2, %c0_3] : memref<1x4x8x32xf32, #tpu.memory_space<vmem>>, vector<1x4x8x32xf32>
    %4 = vector.shape_cast %3 : vector<1x4x8x32xf32> to vector<4x8x32xf32>
    %c0_4 = arith.constant 0 : index
    %c0_5 = arith.constant 0 : index
    %c0_6 = arith.constant 0 : index
    %5 = vector.load %arg4[%c0_4, %c0_5, %c0_6] : memref<1x8x32xi32, #tpu.memory_space<vmem>>, vector<1x8x32xi32>
    %6 = vector.shape_cast %5 : vector<1x8x32xi32> to vector<8x32xi32>
    %cst = arith.constant dense<0xFF800000> : vector<8x32xf32>
    %7 = vector.multi_reduction <maximumf>, %4, %cst [0] : vector<4x8x32xf32> to vector<8x32xf32>
    %8 = vector.shape_cast %7 : vector<8x32xf32> to vector<1x8x32xf32>
    %9 = vector.broadcast %8 : vector<1x8x32xf32> to vector<4x8x32xf32>
    %10 = arith.subf %4, %9 : vector<4x8x32xf32>
    %11 = math.exp %10 : vector<4x8x32xf32>
    %cst_7 = arith.constant dense<0.000000e+00> : vector<8x32xf32>
    %12 = vector.multi_reduction <add>, %11, %cst_7 [0] : vector<4x8x32xf32> to vector<8x32xf32>
    %13 = math.log %12 : vector<8x32xf32>
    %14 = arith.addf %7, %13 : vector<8x32xf32>
    %15 = tpu.iota {dimensions = array<i32: 0>} : vector<4x8x32xi32>
    %16 = vector.shape_cast %6 : vector<8x32xi32> to vector<1x8x32xi32>
    %17 = vector.broadcast %16 : vector<1x8x32xi32> to vector<4x8x32xi32>
    %18 = arith.cmpi eq, %15, %17 : vector<4x8x32xi32>
    %cst_8 = arith.constant 0.000000e+00 : f32
    %19 = vector.broadcast %cst_8 : f32 to vector<4x8x32xf32>
    %20 = arith.select %18, %4, %19 : vector<4x8x32xi1>, vector<4x8x32xf32>
    %cst_9 = arith.constant dense<0.000000e+00> : vector<8x32xf32>
    %21 = vector.multi_reduction <add>, %20, %cst_9 [0] : vector<4x8x32xf32> to vector<8x32xf32>
    %22 = arith.subf %14, %21 : vector<8x32xf32>
    %c-100_i32 = arith.constant -100 : i32
    %23 = vector.broadcast %c-100_i32 : i32 to vector<8x32xi32>
    %24 = arith.cmpi ne, %6, %23 : vector<8x32xi32>
    %c0_10 = arith.constant 0 : index
    %c0_11 = arith.constant 0 : index
    %25 = vector.load %arg7[%c0_10, %c0_11] : memref<8x32xf32, #tpu.memory_space<vmem>>, vector<8x32xf32>
    %cst_12 = arith.constant 0.000000e+00 : f32
    %26 = vector.broadcast %cst_12 : f32 to vector<8x32xf32>
    %27 = arith.select %24, %22, %26 : vector<8x32xi1>, vector<8x32xf32>
    %28 = arith.addf %25, %27 : vector<8x32xf32>
    %c0_13 = arith.constant 0 : index
    %c0_14 = arith.constant 0 : index
    %29 = vector.load %arg7[%c0_13, %c0_14] : memref<8x32xf32, #tpu.memory_space<vmem>>, vector<8x32xf32>
    tpu.vector_store %arg7[%c0_13, %c0_14], %28 {strides = array<i32>} : memref<8x32xf32, #tpu.memory_space<vmem>>, vector<8x32xf32>,
    %c0_15 = arith.constant 0 : index
    %c0_16 = arith.constant 0 : index
    %30 = vector.load %arg8[%c0_15, %c0_16] : memref<8x32xf32, #tpu.memory_space<vmem>>, vector<8x32xf32>
    %31 = arith.extui %24 : vector<8x32xi1> to vector<8x32xi32>
    %32 = arith.sitofp %31 : vector<8x32xi32> to vector<8x32xf32>
    %33 = arith.addf %30, %32 : vector<8x32xf32>
    %c0_17 = arith.constant 0 : index
    %c0_18 = arith.constant 0 : index
    %34 = vector.load %arg8[%c0_17, %c0_18] : memref<8x32xf32, #tpu.memory_space<vmem>>, vector<8x32xf32>
    tpu.vector_store %arg8[%c0_17, %c0_18], %33 {strides = array<i32>} : memref<8x32xf32, #tpu.memory_space<vmem>>, vector<8x32xf32>,
    %c0_i32_19 = arith.constant 0 : i32
    %35 = arith.cmpi eq, %arg2, %c0_i32_19 : i32
    %36 = arith.extui %35 : i1 to i32
    %c0_i32_20 = arith.constant 0 : i32
    %37 = arith.cmpi ne, %36, %c0_i32_20 : i32
    scf.if %37 {
      %c0_21 = arith.constant 0 : index
      %c0_22 = arith.constant 0 : index
      %38 = vector.load %arg7[%c0_21, %c0_22] : memref<8x32xf32, #tpu.memory_space<vmem>>, vector<8x32xf32>
      %39 = vector.shape_cast %38 : vector<8x32xf32> to vector<1x8x32xf32>
      %cst_23 = arith.constant dense<0.000000e+00> : vector<1xf32>
      %40 = vector.multi_reduction <add>, %39, %cst_23 [1, 2] : vector<1x8x32xf32> to vector<1xf32>
      %41 = vector.shape_cast %40 : vector<1xf32> to vector<1x1x1xf32>
      %42 = vector.extract %41[0, 0, 0] : f32 from vector<1x1x1xf32>
      %43 = vector.broadcast %42 : f32 to vector<1x1xf32>
      %c0_24 = arith.constant 0 : index
      %c0_25 = arith.constant 0 : index
      %c0_26 = arith.constant 0 : index
      %c0_27 = arith.constant 0 : index
      %44 = vector.load %arg5[%c0_24, %c0_25, %c0_26, %c0_27] : memref<1x1x1x1xf32, #tpu.memory_space<vmem>>, vector<1x1x1x1xf32>
      %45 = vector.shape_cast %44 : vector<1x1x1x1xf32> to vector<1x1xf32>
      %46 = vector.shape_cast %43 : vector<1x1xf32> to vector<1x1x1x1xf32>
      tpu.vector_store %arg5[%c0_24, %c0_25, %c0_26, %c0_27], %46 {strides = array<i32>} : memref<1x1x1x1xf32, #tpu.memory_space<vmem>>, vector<1x1x1x1xf32>,
      %c0_28 = arith.constant 0 : index
      %c0_29 = arith.constant 0 : index
      %47 = vector.load %arg8[%c0_28, %c0_29] : memref<8x32xf32, #tpu.memory_space<vmem>>, vector<8x32xf32>
      %48 = vector.shape_cast %47 : vector<8x32xf32> to vector<1x8x32xf32>
      %cst_30 = arith.constant dense<0.000000e+00> : vector<1xf32>
      %49 = vector.multi_reduction <add>, %48, %cst_30 [1, 2] : vector<1x8x32xf32> to vector<1xf32>
      %50 = vector.shape_cast %49 : vector<1xf32> to vector<1x1x1xf32>
      %51 = vector.extract %50[0, 0, 0] : f32 from vector<1x1x1xf32>
      %52 = vector.broadcast %51 : f32 to vector<1x1xf32>
      %c0_31 = arith.constant 0 : index
      %c0_32 = arith.constant 0 : index
      %c0_33 = arith.constant 0 : index
      %c0_34 = arith.constant 0 : index
      %53 = vector.load %arg6[%c0_31, %c0_32, %c0_33, %c0_34] : memref<1x1x1x1xf32, #tpu.memory_space<vmem>>, vector<1x1x1x1xf32>
      %54 = vector.shape_cast %53 : vector<1x1x1x1xf32> to vector<1x1xf32>
      %55 = vector.shape_cast %52 : vector<1x1xf32> to vector<1x1x1x1xf32>
      tpu.vector_store %arg6[%c0_31, %c0_32, %c0_33, %c0_34], %55 {strides = array<i32>} : memref<1x1x1x1xf32, #tpu.memory_space<vmem>>, vector<1x1x1x1xf32>,
    } else {
    }
    return
  }
  func.func @transform_0(%arg0: i32, %arg1: i32, %arg2: i32) -> (i32, i32, i32, i32) {
    %c1_i32 = arith.constant 1 : i32
    %0 = arith.muli %arg1, %c1_i32 : i32
    %1 = arith.addi %0, %arg2 : i32
    %c0_i32 = arith.constant 0 : i32
    %c0_i32_0 = arith.constant 0 : i32
    %c0_i32_1 = arith.constant 0 : i32
    return %arg0, %c0_i32, %c0_i32_0, %1 : i32, i32, i32, i32
  }
  func.func @transform_1(%arg0: i32, %arg1: i32, %arg2: i32) -> (i32, i32, i32) {
    %c1_i32 = arith.constant 1 : i32
    %0 = arith.muli %arg1, %c1_i32 : i32
    %1 = arith.addi %0, %arg2 : i32
    %c0_i32 = arith.constant 0 : i32
    %c0_i32_0 = arith.constant 0 : i32
    return %arg0, %c0_i32, %1 : i32, i32, i32
  }
  func.func @transform_2(%arg0: i32, %arg1: i32, %arg2: i32) -> (i32, i32, i32, i32) {
    %c0_i32 = arith.constant 0 : i32
    %c0_i32_0 = arith.constant 0 : i32
    %c0_i32_1 = arith.constant 0 : i32
    return %arg0, %arg1, %c0_i32, %c0_i32_0 : i32, i32, i32, i32
  }
  func.func @transform_3(%arg0: i32, %arg1: i32, %arg2: i32) -> (i32, i32, i32, i32) {
    %c0_i32 = arith.constant 0 : i32
    %c0_i32_0 = arith.constant 0 : i32
    %c0_i32_1 = arith.constant 0 : i32
    return %arg0, %arg1, %c0_i32, %c0_i32_0 : i32, i32, i32, i32
  }
}

</mosaic_0001>

<llo_original>
// kernel: tpu_custom_call.1
$region0: #{tpu_custom_call.1}
  #allocation0 [shape = 'u32[]', space=smem, size = 0x4, offset = 0x4, fixed_abs, tag = 'smem constant byte address 0x4 - core index']
  #allocation1 [shape = 'u32[144,128]{1,0:T(1,128)}', space=vmem, size = 0x12000, scoped, tag = 'internal scratch']
  #allocation2 [shape = 'f32[8,32]{1,0:T(8,128)}', space=vmem, size = 0x1000, scoped, tag = 'scratch operand']
  #allocation3 [shape = 'f32[8,32]{1,0:T(8,128)}', space=vmem, size = 0x1000, scoped, tag = 'scratch operand']
  %s0 = inlined_call_operand.hbm [shape: f32[2,4,8,32], index: 0, kind: input, shape index: {}]
  %s1 = inlined_call_operand.hbm [shape: s32[2,8,32], index: 1, kind: input, shape index: {}]
  %s2 = inlined_call_operand.vmem [shape: f32[2,1,1,1], index: 2, kind: output, shape index: {0}]
  %s3 = inlined_call_operand.vmem [shape: f32[2,1,1,1], index: 3, kind: output, shape index: {1}]
  %4 = xla_tuple %s2, %s3
  %s5 = sld [smem:[#allocation0]]
  $region65: #{tpu_custom_call.1} parent=0
    _
  %s7 = ssub.s32 1, %s5
  %s8 = scalar_select 0, %s7, %s5
  $region1: #{tpu_custom_call.1} parent=0
    #allocation4 [shape = 'u8[32768]{0}', space=vmem, size = 0x8000, scoped, tag = 'input window, operand 0']
    #allocation5 [shape = 's32[2]{0}', space=sflag, size = 0x8, scoped, tag = 'scoped memory for tpu_custom_call.1']
    #allocation6 [shape = 'u8[8192]{0}', space=vmem, size = 0x2000, scoped, tag = 'input window, operand 1']
    #allocation7 [shape = 's32[2]{0}', space=sflag, size = 0x8, scoped, tag = 'scoped memory for tpu_custom_call.1']
    %9 = vsyncpa [#allocation5], 0
    %s10 = scalar_lea.sflag [#allocation5], 1
    %11 = vsyncpa %s10, 0
    %12 = vsyncpa [#allocation7], 0
    %s13 = scalar_lea.sflag [#allocation7], 1
    %14 = vsyncpa %s13, 0
    loop: start=0, step=1, limit=4
    $region2: #{tpu_custom_call.1} parent=1 // loop_pre_header
      _
    $region3: #{tpu_custom_call.1} parent=1 // loop_header
      %s16 = sphi 0, %s20
      %p17 = scmp.ge.s32.totalorder %s16, 4
      %s23 = sphi 0, %s42
      %s24 = sphi 0, %s38
      %s25 = sphi 0, %s34
      %s26 = sphi 0, %s23
      %s27 = sphi 0, %s24
      %s28 = sphi 0, %s25
      %s29 = sphi 0, %s26
      %s30 = sphi 0, %s27
      %s31 = sphi 0, %s28
      %s49 = sphi 0, %s51
      %s52 = sphi 0, %s49
      %s53 = sphi 0, %s52
      %s69 = sphi 0, %s53
      %s79 = sphi 0, %s81
      %s82 = sphi 0, %s79
      %s83 = sphi 0, %s82
      %s99 = sphi 0, %s83
      %s107 = sphi 0, %s109
      %s110 = sphi 0, %s107
      %s111 = sphi 0, %s110
      %s127 = sphi 0, %s111
      %s135 = sphi 0, %s137
      %s138 = sphi 0, %s135
      %s139 = sphi 0, %s138
      %s155 = sphi 0, %s139
    $region4: #{tpu_custom_call.1} parent=1 // loop_header_branch
      %19 = sbr.rel (%p17) target = $region8
    $region5: #{tpu_custom_call.1} parent=1 // loop_body
      %s21 = ssub.s32 %s16, 1
      %s22 = ssub.s32 %s16, 2
      %s32 = sadd.s32 1, %s25
      %p33 = scmp.ge.s32.totalorder %s32, 1
      %s34 = scalar_select %p33, 0, %s32
      %s35 = sadd.s32 1, %s24
      %s36 = scalar_select %p33, %s35, %s24
      %p37 = scmp.ge.s32.totalorder %s36, 1
      %s38 = scalar_select %p37, 0, %s36
      %s39 = sadd.s32 1, %s23
      %s40 = scalar_select %p37, %s39, %s23
      %p41 = scmp.ge.s32.totalorder %s40, 2
      %s42 = scalar_select %p41, 0, %s40
      %s43 = sadd.s32 %s24, %s25
      %s44 = sadd.s32 %s38, %s34
      %s45 = ssub.s32 %s23, %s42
      %s46 = ssub.s32 %s43, %s44
      %s47 = sor.u32 %s45, %s46
      %p48 = scmp.eq.s32.totalorder %s47, 0
      %s50 = sadd.s32 %s49, 1
      %s51 = scalar_select %p48, %s49, %s50
      %p54 = pneg %p48
      %p55 = scmp.eq.s32.totalorder %s16, 1
      %p56 = por %p54, %p55
      %p57 = scmp.ne.s32.totalorder %s49, %s52
      %p58 = scmp.eq.s32.totalorder %s16, 0
      %p59 = por %p57, %p58
      %p60 = scmp.ne.s32.totalorder %s49, %s52
      %p61 = scmp.eq.s32.totalorder %s21, 1
      %p62 = por %p60, %p61
      %p63 = scmp.ne.s32.totalorder %s52, %s53
      %p64 = scmp.eq.s32.totalorder %s21, 0
      %p65 = por %p63, %p64
      %p66 = scmp.ne.s32.totalorder %s52, %s53
      %p67 = scmp.eq.s32.totalorder %s22, 1
      %p68 = por %p66, %p67
      %p70 = scmp.ne.s32.totalorder %s53, %s69
      %p71 = scmp.eq.s32.totalorder %s22, 0
      %p72 = por %p70, %p71
      %s73 = sadd.s32 %s24, %s25
      %s74 = sadd.s32 %s38, %s34
      %s75 = ssub.s32 %s23, %s42
      %s76 = ssub.s32 %s73, %s74
      %s77 = sor.u32 %s75, %s76
      %p78 = scmp.eq.s32.totalorder %s77, 0
      %s80 = sadd.s32 %s79, 1
      %s81 = scalar_select %p78, %s79, %s80
      %p84 = pneg %p78
      %p85 = scmp.eq.s32.totalorder %s16, 1
      %p86 = por %p84, %p85
      %p87 = scmp.ne.s32.totalorder %s79, %s82
      %p88 = scmp.eq.s32.totalorder %s16, 0
      %p89 = por %p87, %p88
      %p90 = scmp.ne.s32.totalorder %s79, %s82
      %p91 = scmp.eq.s32.totalorder %s21, 1
      %p92 = por %p90, %p91
      %p93 = scmp.ne.s32.totalorder %s82, %s83
      %p94 = scmp.eq.s32.totalorder %s21, 0
      %p95 = por %p93, %p94
      %p96 = scmp.ne.s32.totalorder %s82, %s83
      %p97 = scmp.eq.s32.totalorder %s22, 1
      %p98 = por %p96, %p97
      %p100 = scmp.ne.s32.totalorder %s83, %s99
      %p101 = scmp.eq.s32.totalorder %s22, 0
      %p102 = por %p100, %p101
      %s103 = ssub.s32 %s23, %s42
      %s104 = ssub.s32 %s24, %s38
      %s105 = sor.u32 %s103, %s104
      %p106 = scmp.eq.s32.totalorder %s105, 0
      %s108 = sadd.s32 %s107, 1
      %s109 = scalar_select %p106, %s107, %s108
      %p112 = pneg %p106
      %p113 = scmp.eq.s32.totalorder %s16, 1
      %p114 = por %p112, %p113
      %p115 = scmp.ne.s32.totalorder %s107, %s110
      %p116 = scmp.eq.s32.totalorder %s16, 0
      %p117 = por %p115, %p116
      %p118 = scmp.ne.s32.totalorder %s107, %s110
      %p119 = scmp.eq.s32.totalorder %s21, 1
      %p120 = por %p118, %p119
      %p121 = scmp.ne.s32.totalorder %s110, %s111
      %p122 = scmp.eq.s32.totalorder %s21, 0
      %p123 = por %p121, %p122
      %p124 = scmp.ne.s32.totalorder %s110, %s111
      %p125 = scmp.eq.s32.totalorder %s22, 1
      %p126 = por %p124, %p125
      %p128 = scmp.ne.s32.totalorder %s111, %s127
      %p129 = scmp.eq.s32.totalorder %s22, 0
      %p130 = por %p128, %p129
      %s131 = ssub.s32 %s23, %s42
      %s132 = ssub.s32 %s24, %s38
      %s133 = sor.u32 %s131, %s132
      %p134 = scmp.eq.s32.totalorder %s133, 0
      %s136 = sadd.s32 %s135, 1
      %s137 = scalar_select %p134, %s135, %s136
      %p140 = pneg %p134
      %p141 = scmp.eq.s32.totalorder %s16, 1
      %p142 = por %p140, %p141
      %p143 = scmp.ne.s32.totalorder %s135, %s138
      %p144 = scmp.eq.s32.totalorder %s16, 0
      %p145 = por %p143, %p144
      %p146 = scmp.ne.s32.totalorder %s135, %s138
      %p147 = scmp.eq.s32.totalorder %s21, 1
      %p148 = por %p146, %p147
      %p149 = scmp.ne.s32.totalorder %s138, %s139
      %p150 = scmp.eq.s32.totalorder %s21, 0
      %p151 = por %p149, %p150
      %p152 = scmp.ne.s32.totalorder %s138, %s139
      %p153 = scmp.eq.s32.totalorder %s22, 1
      %p154 = por %p152, %p153
      %p156 = scmp.ne.s32.totalorder %s139, %s155
      %p157 = scmp.eq.s32.totalorder %s22, 0
      %p158 = por %p156, %p157
      %p159 = scmp.le.s32.totalorder 1, %s16
      %p160 = scmp.lt.s32.totalorder %s16, 3
      %p161 = pnand %p159, %p160
      %p162 = pneg %p161
      // Predicated region
      $region9: #{tpu_custom_call.1} parent=5 // pred_check
        _
      $region10: #{tpu_custom_call.1} parent=5 // pred_check_branch
        %164 = sbr.rel (%p161) target = $region12
      $region11: #{tpu_custom_call.1} parent=5 // pred_region
        %s165 = ssub.s32 %s16, 1
      $region12: #{tpu_custom_call.1} parent=5 // pred_fallthru
        _
      %p166 = scmp.lt.s32.totalorder %s16, 2
      // Predicated region
      $region13: #{tpu_custom_call.1} parent=5 // pred_check
        %p167 = pneg %p166
      $region14: #{tpu_custom_call.1} parent=5 // pred_check_branch
        %169 = sbr.rel (%p167) target = $region16
      $region15: #{tpu_custom_call.1} parent=5 // pred_region
        // Predicated region
        $region17: #{tpu_custom_call.1} parent=15 // pred_check
          %p170 = pneg %p59
        $region18: #{tpu_custom_call.1} parent=15 // pred_check_branch
          %172 = sbr.rel (%p170) target = $region20
        $region19: #{tpu_custom_call.1} parent=15 // pred_region
          %s173 = sand.u32 %s49, 1
          %s174 = scalar_lea.sflag [#allocation5], %s173
          %s175 = sand.u32 %s49, 1
          %s176 = smul.addr %s175, 32
          %s177 = scalar_lea.vmem [#allocation4], %s176
          %s178 = sadd.s32 %s24, %s25
          %s180 = ssub.s32 512, 512
          %181 = vsyncadd %s174, %s180
          %s182 = smul.addr %s23, 4
          %s183 = sadd.s32 %s178, %s182
          %s184 = smul.addr %s183, 128
          %s185 = scalar_lea.hbm %s0, %s184
          %s186 = sshll.u32 %s177, 4
          %s187 = int_to_ptr.vmem [resolvable:$true] %s186
          %192 = dma.hbm_to_vmem [thread:$0]  %s185, 512, %s187, %s174, 128, 128, 8
        $region20: #{tpu_custom_call.1} parent=15 // pred_fallthru
          _
        // Predicated region
        $region21: #{tpu_custom_call.1} parent=15 // pred_check
          %p193 = pneg %p89
        $region22: #{tpu_custom_call.1} parent=15 // pred_check_branch
          %195 = sbr.rel (%p193) target = $region24
        $region23: #{tpu_custom_call.1} parent=15 // pred_region
          %s196 = sand.u32 %s79, 1
          %s197 = scalar_lea.sflag [#allocation7], %s196
          %s198 = sand.u32 %s79, 1
          %s199 = smul.addr %s198, 8
          %s200 = scalar_lea.vmem [#allocation6], %s199
          %s201 = sadd.s32 %s24, %s25
          %s203 = ssub.s32 128, 128
          %204 = vsyncadd %s197, %s203
          %s205 = sadd.s32 %s201, %s23
          %s206 = smul.addr %s205, 128
          %s207 = scalar_lea.hbm %s1, %s206
          %s209 = sshll.u32 %s200, 4
          %s210 = int_to_ptr.vmem [resolvable:$true] %s209
          %212 = dma.hbm_to_vmem [thread:$0]  %s207, 128, %s210, %s197
        $region24: #{tpu_custom_call.1} parent=15 // pred_fallthru
          _
      $region16: #{tpu_custom_call.1} parent=5 // pred_fallthru
        _
      %p213 = scmp.le.s32.totalorder 1, %s16
      %p214 = scmp.lt.s32.totalorder %s16, 3
      %p215 = pnand %p213, %p214
      %p216 = pneg %p215
      // Predicated region
      $region25: #{tpu_custom_call.1} parent=5 // pred_check
        _
      $region26: #{tpu_custom_call.1} parent=5 // pred_check_branch
        %218 = sbr.rel (%p215) target = $region28
      $region27: #{tpu_custom_call.1} parent=5 // pred_region
        %s219 = ssub.s32 %s16, 1
        %s220 = sand.u32 %s52, 1
        %s221 = scalar_lea.sflag [#allocation5], %s220
        %s222 = sand.u32 %s52, 1
        %s223 = smul.addr %s222, 32
        %s224 = scalar_lea.vmem [#allocation4], %s223
        // Predicated region
        $region29: #{tpu_custom_call.1} parent=27 // pred_check
          %p225 = pneg %p65
        $region30: #{tpu_custom_call.1} parent=27 // pred_check_branch
          %227 = sbr.rel (%p225) target = $region32
        $region31: #{tpu_custom_call.1} parent=27 // pred_region
          %228 = dma.done %s221, 512
        $region32: #{tpu_custom_call.1} parent=27 // pred_fallthru
          _
        %s229 = sand.u32 %s82, 1
        %s230 = scalar_lea.sflag [#allocation7], %s229
        %s231 = sand.u32 %s82, 1
        %s232 = smul.addr %s231, 8
        %s233 = scalar_lea.vmem [#allocation6], %s232
        // Predicated region
        $region33: #{tpu_custom_call.1} parent=27 // pred_check
          %p234 = pneg %p95
        $region34: #{tpu_custom_call.1} parent=27 // pred_check_branch
          %236 = sbr.rel (%p234) target = $region36
        $region35: #{tpu_custom_call.1} parent=27 // pred_region
          %237 = dma.done %s230, 128
        $region36: #{tpu_custom_call.1} parent=27 // pred_fallthru
          _
        %s238 = sand.u32 %s52, 1
        %s239 = scalar_lea.sflag [#allocation5], %s238
        %s240 = sand.u32 %s52, 1
        %s241 = smul.addr %s240, 32
        %s242 = scalar_lea.vmem [#allocation4], %s241
        %p243 = pneg %p65
        %p244 = pneg %p62
        %s245 = sand.u32 %s82, 1
        %s246 = scalar_lea.sflag [#allocation7], %s245
        %s247 = sand.u32 %s82, 1
        %s248 = smul.addr %s247, 8
        %s249 = scalar_lea.vmem [#allocation6], %s248
        %p250 = pneg %p95
        %p251 = pneg %p92
        %p252 = pneg %p123
        %p253 = pneg %p120
        %p254 = scmp.lt.s32.totalorder %s26, 1
        %s255 = scalar_select %p254, %s26, 1
        %p256 = scmp.lt.s32.totalorder %s27, 0
        %s257 = scalar_select %p256, %s27, 0
        %s258 = sadd.s32 %s257, %s255
        %s259 = scalar_lea.vmem %s2, %s258
        %p260 = pneg %p151
        %p261 = pneg %p148
        %p262 = scmp.lt.s32.totalorder %s26, 1
        %s263 = scalar_select %p262, %s26, 1
        %p264 = scmp.lt.s32.totalorder %s27, 0
        %s265 = scalar_select %p264, %s27, 0
        %s266 = sadd.s32 %s265, %s263
        %s267 = scalar_lea.vmem %s3, %s266
        %s268 = sadd.s32 %s27, %s28
        %s269 = sadd.s32 %s27, %s28
        %p270 = scmp.lt.s32.totalorder %s26, 1
        %s271 = scalar_select %p270, %s26, 1
        %p272 = scmp.lt.s32.totalorder %s27, 0
        %s273 = scalar_select %p272, %s27, 0
        %s274 = sadd.s32 %s273, %s271
        %s275 = scalar_lea.vmem %s2, %s274
        %p276 = scmp.lt.s32.totalorder %s26, 1
        %s277 = scalar_select %p276, %s26, 1
        %p278 = scmp.lt.s32.totalorder %s27, 0
        %s279 = scalar_select %p278, %s27, 0
        %s280 = sadd.s32 %s279, %s277
        %s281 = scalar_lea.vmem %s3, %s280
        %p282 = scmp.eq.s32.totalorder %s28, 0
        // Predicated region
        $region37: #{tpu_custom_call.1} parent=27 // pred_check
          %p283 = pneg %p282
        $region38: #{tpu_custom_call.1} parent=27 // pred_check_branch
          %285 = sbr.rel (%p283) target = $region40
        $region39: #{tpu_custom_call.1} parent=27 // pred_region
          %vm286 = vcmask 261120
          %287 = vst.msk [vmem:[#allocation2] sm:$0xff] %vm286, 0.0
          %288 = vst.msk [vmem:[#allocation3] sm:$0xff] %vm286, 0.0
        $region40: #{tpu_custom_call.1} parent=27 // pred_fallthru
          _
        %v289 = vld [vmem:[%s224] sm:$0xff]
        %v290 = vld [vmem:[%s224 + $0x8] sm:$0xff]
        %v291 = vld [vmem:[%s224 + $0x10] sm:$0xff]
        %v292 = vld [vmem:[%s224 + $0x18] sm:$0xff]
        %v293 = vld [vmem:[%s233] sm:$0xff]
        %vm294 = vcmask 261120
        %v295 = vsel %vm294, %v289, -inf
        %v296 = vsel %vm294, %v290, -inf
        %v297 = vsel %vm294, %v291, -inf
        %v298 = vsel %vm294, %v292, -inf
        %v299 = vmax.f32 %v295, %v296
        %v300 = vmax.f32 %v297, %v298
        %v301 = vmax.f32 %v299, %v300
        %v302 = vsub.f32 %v289, %v301
        %v303 = vsub.f32 %v290, %v301
        %v304 = vsub.f32 %v291, %v301
        %v305 = vsub.f32 %v292, %v301
        %v306 = vmul.f32 %v302, 1.442695
        %v307 = vpow.pop %v306
        %v308 = vmul.f32 %v303, 1.442695
        %v309 = vpow.pop %v308
        %v310 = vmul.f32 %v304, 1.442695
        %v311 = vpow.pop %v310
        %v312 = vmul.f32 %v305, 1.442695
        %v313 = vpow.pop %v312
        %v314 = vsel %vm294, %v307, 0.0
        %v315 = vsel %vm294, %v309, 0.0
        %v316 = vadd.f32 %v314, %v315
        %v317 = vsel %vm294, %v311, 0.0
        %v318 = vadd.f32 %v316, %v317
        %v319 = vsel %vm294, %v313, 0.0
        %v320 = vadd.f32 %v318, %v319
        %v321 = vlog2.pop %v320
        %v322 = vmul.f32 %v321, 0.6931472
        %v323 = vadd.f32 %v301, %v322
        %vm324 = vcmp.eq.s32.totalorder %v293, 0
        %vm325 = vcmp.eq.s32.totalorder %v293, 1
        %vm326 = vcmp.eq.s32.totalorder %v293, 2
        %vm327 = vcmp.eq.s32.totalorder %v293, 3
        %v328 = vsel %vm324, %v289, 0.0
        %v329 = vsel %vm325, %v290, 0.0
        %v330 = vsel %vm326, %v291, 0.0
        %v331 = vsel %vm327, %v292, 0.0
        %v332 = vsel %vm294, %v328, 0.0
        %v333 = vsel %vm294, %v329, 0.0
        %v334 = vadd.f32 %v332, %v333
        %v335 = vsel %vm294, %v330, 0.0
        %v336 = vadd.f32 %v334, %v335
        %v337 = vsel %vm294, %v331, 0.0
        %v338 = vadd.f32 %v336, %v337
        %v339 = vsub.f32 %v323, %v338
        %vm340 = vcmp.ne.s32.totalorder %v293, 4294967196
        %v341 = vld [vmem:[#allocation2] sm:$0xff]
        %v342 = vsel %vm340, %v339, 0.0
        %v343 = vadd.f32 %v341, %v342
        %344 = vst.msk [vmem:[#allocation2] sm:$0xff] %vm294, %v343
        %v345 = vld [vmem:[#allocation3] sm:$0xff]
        %v346 = vsel %vm340, 1, 0
        %v347 = vcvt.s32.f32 %v346
        %v348 = vadd.f32 %v345, %v347
        %349 = vst.msk [vmem:[#allocation3] sm:$0xff] %vm294, %v348
        // Predicated region
        $region41: #{tpu_custom_call.1} parent=27 // pred_check
          %p350 = pneg %p282
        $region42: #{tpu_custom_call.1} parent=27 // pred_check_branch
          %352 = sbr.rel (%p350) target = $region44
        $region43: #{tpu_custom_call.1} parent=27 // pred_region
          %v353 = vld [vmem:[#allocation2] sm:$0xff]
          %v354 = vsel %vm294, %v353, 0.0
          %355 = vadd.xlane.f32.xlu0 %v354
          %v356 = vpop.xlane.xlu0 %355
          %v357 = vrot.slane %v356, 4
          %v358 = vadd.f32 %v356, %v357
          %v359 = vrot.slane %v358, 2
          %v360 = vadd.f32 %v358, %v359
          %v361 = vrot.slane %v360, 1
          %v362 = vadd.f32 %v360, %v361
          %s363 = vtos %v362
          %v364 = vstv %s363
          %vm365 = vcmask 0
          %366 = vst.msk [vmem:[%s275] sm:$0x1] %vm365, %v364
          %v367 = vld [vmem:[#allocation3] sm:$0xff]
          %v368 = vsel %vm294, %v367, 0.0
          %369 = vadd.xlane.f32.xlu0 %v368
          %v370 = vpop.xlane.xlu0 %369
          %v371 = vrot.slane %v370, 4
          %v372 = vadd.f32 %v370, %v371
          %v373 = vrot.slane %v372, 2
          %v374 = vadd.f32 %v372, %v373
          %v375 = vrot.slane %v374, 1
          %v376 = vadd.f32 %v374, %v375
          %s377 = vtos %v376
          %v378 = vstv %s377
          %379 = vst.msk [vmem:[%s281] sm:$0x1] %vm365, %v378
        $region44: #{tpu_custom_call.1} parent=27 // pred_fallthru
          _
        %p380 = scmp.lt.s32.totalorder %s26, 1
        %s381 = scalar_select %p380, %s26, 1
        %p382 = scmp.lt.s32.totalorder %s27, 0
        %s383 = scalar_select %p382, %s27, 0
        %s384 = sadd.s32 %s383, %s381
        %s385 = scalar_lea.vmem %s2, %s384
        %p386 = scmp.lt.s32.totalorder %s26, 1
        %s387 = scalar_select %p386, %s26, 1
        %p388 = scmp.lt.s32.totalorder %s27, 0
        %s389 = scalar_select %p388, %s27, 0
        %s390 = sadd.s32 %s389, %s387
        %s391 = scalar_lea.vmem %s3, %s390
        // Predicated region
        $region45: #{tpu_custom_call.1} parent=27 // pred_check
          %p392 = pneg %p120
        $region46: #{tpu_custom_call.1} parent=27 // pred_check_branch
          %394 = sbr.rel (%p392) target = $region48
        $region47: #{tpu_custom_call.1} parent=27 // pred_region
          _
        $region48: #{tpu_custom_call.1} parent=27 // pred_fallthru
          _
        // Predicated region
        $region49: #{tpu_custom_call.1} parent=27 // pred_check
          %p395 = pneg %p148
        $region50: #{tpu_custom_call.1} parent=27 // pred_check_branch
          %397 = sbr.rel (%p395) target = $region52
        $region51: #{tpu_custom_call.1} parent=27 // pred_region
          _
        $region52: #{tpu_custom_call.1} parent=27 // pred_fallthru
          _
      $region28: #{tpu_custom_call.1} parent=5 // pred_fallthru
        _
      %p398 = scmp.le.s32.totalorder 2, %s16
      // Predicated region
      $region53: #{tpu_custom_call.1} parent=5 // pred_check
        %p399 = pneg %p398
      $region54: #{tpu_custom_call.1} parent=5 // pred_check_branch
        %401 = sbr.rel (%p399) target = $region56
      $region55: #{tpu_custom_call.1} parent=5 // pred_region
        %s402 = ssub.s32 %s16, 2
        // Predicated region
        $region57: #{tpu_custom_call.1} parent=55 // pred_check
          %p403 = pneg %p126
        $region58: #{tpu_custom_call.1} parent=55 // pred_check_branch
          %405 = sbr.rel (%p403) target = $region60
        $region59: #{tpu_custom_call.1} parent=55 // pred_region
          %p406 = scmp.lt.s32.totalorder %s29, 1
          %s407 = scalar_select %p406, %s29, 1
          %p408 = scmp.lt.s32.totalorder %s30, 0
          %s409 = scalar_select %p408, %s30, 0
          %s410 = sadd.s32 %s409, %s407
          %s411 = scalar_lea.vmem %s2, %s410
        $region60: #{tpu_custom_call.1} parent=55 // pred_fallthru
          _
        // Predicated region
        $region61: #{tpu_custom_call.1} parent=55 // pred_check
          %p412 = pneg %p154
        $region62: #{tpu_custom_call.1} parent=55 // pred_check_branch
          %414 = sbr.rel (%p412) target = $region64
        $region63: #{tpu_custom_call.1} parent=55 // pred_region
          %p415 = scmp.lt.s32.totalorder %s29, 1
          %s416 = scalar_select %p415, %s29, 1
          %p417 = scmp.lt.s32.totalorder %s30, 0
          %s418 = scalar_select %p417, %s30, 0
          %s419 = sadd.s32 %s418, %s416
          %s420 = scalar_lea.vmem %s3, %s419
        $region64: #{tpu_custom_call.1} parent=55 // pred_fallthru
          _
      $region56: #{tpu_custom_call.1} parent=5 // pred_fallthru
        _
    $region6: #{tpu_custom_call.1} parent=1 // loop_footer
      %s20 = sadd.s32 1, %s16
    $region7: #{tpu_custom_call.1} parent=1 // loop_footer_branch
      %15 = sbr.rel target = $region3
    $region8: #{tpu_custom_call.1} parent=1 // loop_exit
      _
    %421 = vsyncpa [#allocation5], 1
    %s422 = scalar_lea.sflag [#allocation5], 1
    %423 = vsyncpa %s422, 1
    %424 = vsyncpa [#allocation7], 1
    %s425 = scalar_lea.sflag [#allocation7], 1
    %426 = vsyncpa %s425, 1

</llo_original>
